<compile_context>
chip_gen: v7x
topology: tpu7x:2x2x1
jax: 0.10.0
libtpu: 0.0.40
codegen_flags: <defaults>
</compile_context>

<pallas_src>
import jax
import jax.numpy as jnp
from jax.experimental import pallas as pl
from jax.experimental.pallas import tpu as pltpu


def _lse_loss_kernel(logits_ref, targets_ref, out_ref):
    # logits_ref / targets_ref: (tb, C) tile; out_ref: (tb, 1).
    x = logits_ref[...].astype(jnp.float32)
    t = targets_ref[...].astype(jnp.float32)

    # Numerically-stable softmax along the class (lane) axis.  Exact divide:
    # the kernel is HBM-bound, and the approximate EUP reciprocal is too lossy
    # for a loss that can be near zero when probs ~= targets.
    m = jnp.max(x, axis=-1, keepdims=True)
    e = jnp.exp(x - m)
    denom = jnp.sum(e, axis=-1, keepdims=True)
    probs = e / denom

    d = probs - t
    out_ref[...] = jnp.sum(d * d, axis=-1, keepdims=True)   # (tb, 1)


def _round_up(x, m):
    return ((x + m - 1) // m) * m


def _vmem_capacity_bytes():
    try:
        return int(pltpu.get_tpu_info().vmem_capacity_bytes)
    except Exception:
        return 64 << 20  # conservative: v7x per-TensorCore VMEM


def _sublane_multiple(*dtypes):
    """Packed-sublane multiple for the narrowest input dtype (8/16/32)."""
    itemsize = min(jnp.dtype(d).itemsize for d in dtypes)
    return 8 * max(1, 4 // max(1, itemsize))


def _choose_tb(B, C, logits_dtype, targets_dtype, vmem_cap):
    """Largest batch tile whose inputs + f32 intermediates fit the VMEM budget."""
    sub = _sublane_multiple(logits_dtype, targets_dtype)
    in_itemsize = (jnp.dtype(logits_dtype).itemsize
                   + jnp.dtype(targets_dtype).itemsize)
    # Per-row VMEM cost: 2x double-buffered input tiles + ~3 full-tile f32
    # intermediates materialized inside the kernel (upcast x, e, probs/diff).
    row_bytes = 2 * C * in_itemsize + 3 * C * 4
    budget = min(vmem_cap // 2, 48 << 20)   # leave >=50% VMEM for compiler scratch
    tb = max(sub, budget // row_bytes)
    tb = min(tb, 1024)                      # diminishing returns past ~1K rows

    # v7x has 2 TensorCores: keep >=2 grid steps for moderately large batches
    # so dimension_semantics=("parallel",) has something to shard.  Costs only
    # ~0.35us of extra step overhead on single-TC v5e/v6e.
    if B >= 256:
        tb = min(tb, _round_up(pl.cdiv(B, 2), sub))

    if B <= tb:
        return _round_up(B, sub)            # single grid step covers everything
    return max(sub, (tb // sub) * sub)


def _in_spec(tb, C, deep):
    index_map = lambda i: (i, 0)
    if deep:
        try:
            # 3-deep buffering hides DMA setup latency when per-tile compute is
            # very short; negligible VMEM cost for tiny tiles.
            return pl.BlockSpec((tb, C), index_map, pipeline_mode=pl.Buffered(3))
        except Exception:
            pass  # older JAX without pipeline_mode: fall back to default (2)
    return pl.BlockSpec((tb, C), index_map)


def lse_loss(logits, targets, reduction: str = "none", *, tb: int | None = None):
    """Pallas equivalent of _LseLoss.forward for 2-D (B, C) inputs."""
    assert logits.ndim == 2 and logits.shape == targets.shape
    B, C = logits.shape

    vmem_cap = _vmem_capacity_bytes()
    if tb is None:
        tb = _choose_tb(B, C, logits.dtype, targets.dtype, vmem_cap)
    num_tiles = pl.cdiv(B, tb)   # ragged last block handled by Pallas; no jnp.pad

    in_itemsize = (jnp.dtype(logits.dtype).itemsize
                   + jnp.dtype(targets.dtype).itemsize)
    in_bytes = 2 * tb * C * in_itemsize          # double-buffered input tiles
    interm_bytes = 3 * tb * C * 4                # in-kernel f32 intermediates
    vmem_limit = int(min(max(in_bytes + interm_bytes + (8 << 20), 16 << 20),
                         max(vmem_cap - (16 << 20), 16 << 20)))

    # Deeper input buffering only when the per-buffer tile is tiny.
    deep = (num_tiles > 2) and (tb * C * in_itemsize < (1 << 19))

    cost = pl.CostEstimate(
        flops=6 * B * C,
        transcendentals=B * C,
        bytes_accessed=B * C * in_itemsize + 4 * B,
    )

    out2d = pl.pallas_call(
        _lse_loss_kernel,
        out_shape=jax.ShapeDtypeStruct((B, 1), jnp.float32),
        grid_spec=pltpu.PrefetchScalarGridSpec(
            num_scalar_prefetch=0,
            grid=(num_tiles,),
            in_specs=[_in_spec(tb, C, deep), _in_spec(tb, C, deep)],
            out_specs=pl.BlockSpec((tb, 1), lambda i: (i, 0)),
        ),
        compiler_params=pltpu.CompilerParams(
            dimension_semantics=("parallel",),
            vmem_limit_bytes=vmem_limit,
        ),
        cost_estimate=cost,
    )(logits, targets)

    loss = out2d[:, 0]
    if reduction == "none":
        return loss
    if reduction == "mean":
        return jnp.mean(loss)
    if reduction == "sum":
        return jnp.sum(loss)
    raise ValueError(f"Invalid reduction: {reduction}")


def _lse_loss_ref(logits, targets, reduction: str = "none"):
    probs = jax.nn.softmax(logits.astype(jnp.float32), axis=1)
    loss = jnp.sum((probs - targets.astype(jnp.float32)) ** 2, axis=-1)
    if reduction == "mean":
        return jnp.mean(loss)
    if reduction == "sum":
        return jnp.sum(loss)
    return loss


if __name__ == "__main__":
    key = jax.random.PRNGKey(0)
    k1, k2, k3, k4, k5, k6 = jax.random.split(key, 6)

    # Test 1: small classification shape, auto tile (single grid step).
    B, C = 16, 32
    logits = jax.random.normal(k1, (B, C), dtype=jnp.float32)
    targets = jax.nn.softmax(jax.random.normal(k2, (B, C), dtype=jnp.float32), axis=1)
    out = jax.block_until_ready(lse_loss(logits, targets, "none"))
    ref = _lse_loss_ref(logits, targets, "none")
    assert out.shape == (B,)
    assert jnp.allclose(out, ref, atol=1e-5, rtol=1e-4), (out, ref)
    assert jnp.allclose(lse_loss(logits, targets, "mean"),
                        _lse_loss_ref(logits, targets, "mean"), atol=1e-5)
    assert jnp.allclose(lse_loss(logits, targets, "sum"),
                        _lse_loss_ref(logits, targets, "sum"), atol=1e-5)

    # Test 2: multi-tile grid (tb=128 -> 2 parallel tiles), f32.
    B2, C2 = 256, 64
    l2 = jax.random.normal(k3, (B2, C2), dtype=jnp.float32)
    t2 = jax.nn.softmax(jax.random.normal(k4, (B2, C2), dtype=jnp.float32), axis=1)
    out2 = jax.block_until_ready(lse_loss(l2, t2, "none", tb=128))
    ref2 = _lse_loss_ref(l2, t2, "none")
    assert jnp.allclose(out2, ref2, atol=1e-5, rtol=1e-4)

    # Test 3: ragged batch (no wrapper pad, partial last block) + bf16 inputs.
    B3, C3 = 203, 96
    l3 = jax.random.normal(k5, (B3, C3), dtype=jnp.float32).astype(jnp.bfloat16)
    t3 = jax.nn.softmax(jax.random.normal(k6, (B3, C3), dtype=jnp.float32),
                        axis=1).astype(jnp.bfloat16)
    out3 = jax.block_until_ready(lse_loss(l3, t3, "none", tb=64))
    ref3 = _lse_loss_ref(l3, t3, "none")
    assert out3.shape == (B3,)
    assert jnp.allclose(out3, ref3, atol=1e-5, rtol=1e-4)

    print("KERNEL_OK")
</pallas_src>

<mosaic_0001>
module attributes {stable_mosaic.version = 11 : i64} {
  func.func @_lse_loss_kernel(%arg0: i32, %arg1: memref<16x32xf32, #tpu.memory_space<vmem>>, %arg2: memref<16x32xf32, #tpu.memory_space<vmem>>, %arg3: memref<16x1xf32, #tpu.memory_space<vmem>>) attributes {dimension_semantics = [#tpu.dimension_semantics<parallel>], iteration_bounds = array<i64: 1>, scalar_prefetch = 0 : i64, scratch_operands = 0 : i64, tpu.core_type = #tpu.core_type<tc>, window_params = [{transform_indices = @transform_0, window_bounds = array<i64: 16, 32>}, {transform_indices = @transform_1, window_bounds = array<i64: 16, 32>}, {transform_indices = @transform_2, window_bounds = array<i64: 16, 1>}]} {
    %c0 = arith.constant 0 : index
    %c0_0 = arith.constant 0 : index
    %0 = vector.load %arg1[%c0, %c0_0] : memref<16x32xf32, #tpu.memory_space<vmem>>, vector<16x32xf32>
    %c0_1 = arith.constant 0 : index
    %c0_2 = arith.constant 0 : index
    %1 = vector.load %arg2[%c0_1, %c0_2] : memref<16x32xf32, #tpu.memory_space<vmem>>, vector<16x32xf32>
    %cst = arith.constant dense<0xFF800000> : vector<16xf32>
    %2 = vector.multi_reduction <maximumf>, %0, %cst [1] : vector<16x32xf32> to vector<16xf32>
    %3 = vector.shape_cast %2 : vector<16xf32> to vector<16x1xf32>
    %4 = vector.broadcast %3 : vector<16x1xf32> to vector<16x32xf32>
    %5 = arith.subf %0, %4 : vector<16x32xf32>
    %6 = math.exp %5 : vector<16x32xf32>
    %cst_3 = arith.constant dense<0.000000e+00> : vector<16xf32>
    %7 = vector.multi_reduction <add>, %6, %cst_3 [1] : vector<16x32xf32> to vector<16xf32>
    %8 = vector.shape_cast %7 : vector<16xf32> to vector<16x1xf32>
    %9 = vector.broadcast %8 : vector<16x1xf32> to vector<16x32xf32>
    %10 = arith.divf %6, %9 : vector<16x32xf32>
    %11 = arith.subf %10, %1 : vector<16x32xf32>
    %12 = arith.mulf %11, %11 : vector<16x32xf32>
    %cst_4 = arith.constant dense<0.000000e+00> : vector<16xf32>
    %13 = vector.multi_reduction <add>, %12, %cst_4 [1] : vector<16x32xf32> to vector<16xf32>
    %14 = vector.shape_cast %13 : vector<16xf32> to vector<16x1xf32>
    %c0_5 = arith.constant 0 : index
    %c0_6 = arith.constant 0 : index
    %15 = vector.load %arg3[%c0_5, %c0_6] : memref<16x1xf32, #tpu.memory_space<vmem>>, vector<16x1xf32>
    tpu.vector_store %arg3[%c0_5, %c0_6], %14 {strides = array<i32>} : memref<16x1xf32, #tpu.memory_space<vmem>>, vector<16x1xf32>,
    return
  }
  func.func @transform_0(%arg0: i32) -> (i32, i32) {
    %c0_i32 = arith.constant 0 : i32
    %c0_i32_0 = arith.constant 0 : i32
    return %arg0, %c0_i32 : i32, i32
  }
  func.func @transform_1(%arg0: i32) -> (i32, i32) {
    %c0_i32 = arith.constant 0 : i32
    %c0_i32_0 = arith.constant 0 : i32
    return %arg0, %c0_i32 : i32, i32
  }
  func.func @transform_2(%arg0: i32) -> (i32, i32) {
    %c0_i32 = arith.constant 0 : i32
    %c0_i32_0 = arith.constant 0 : i32
    return %arg0, %c0_i32 : i32, i32
  }
}

</mosaic_0001>

<llo_original>
// kernel: tpu_custom_call.1
$region0: #{tpu_custom_call.1}
  #allocation0 [shape = 'u32[]', space=smem, size = 0x4, offset = 0x4, fixed_abs, tag = 'smem constant byte address 0x4 - core index']
  #allocation1 [shape = 'u32[144,128]{1,0:T(1,128)}', space=vmem, size = 0x12000, scoped, tag = 'internal scratch']
  %s0 = inlined_call_operand.hbm [shape: f32[16,32], index: 0, kind: input, shape index: {}]
  %s1 = inlined_call_operand.hbm [shape: f32[16,32], index: 1, kind: input, shape index: {}]
  %s2 = inlined_call_operand.vmem [shape: f32[16,1], index: 2, kind: output, shape index: {}]
  %s3 = sld [smem:[#allocation0]]
  $region26: #{tpu_custom_call.1} parent=0
    _
  %s5 = ssub.s32 1, %s3
  %s6 = scalar_select 0, %s5, %s3
  $region1: #{tpu_custom_call.1} parent=0
    #allocation2 [shape = 'u8[8192]{0}', space=vmem, size = 0x2000, scoped, tag = 'input window, operand 0, single buffered']
    #allocation3 [shape = 's32[1]{0}', space=sflag, size = 0x4, scoped, tag = 'scoped memory for tpu_custom_call.1']
    #allocation4 [shape = 'u8[8192]{0}', space=vmem, size = 0x2000, scoped, tag = 'input window, operand 1, single buffered']
    #allocation5 [shape = 's32[1]{0}', space=sflag, size = 0x4, scoped, tag = 'scoped memory for tpu_custom_call.1']
    %7 = vsyncpa [#allocation3], 0
    %8 = vsyncpa [#allocation5], 0
    // Predicated region
    $region2: #{tpu_custom_call.1} parent=1 // pred_check
      _
    $region3: #{tpu_custom_call.1} parent=1 // pred_check_branch
      %10 = sbr.rel (0) target = $region5
    $region4: #{tpu_custom_call.1} parent=1 // pred_region
      %s12 = ssub.s32 256, 256
      %13 = vsyncadd [#allocation3], %s12
      %s14 = sshll.u32 [#allocation2], 4
      %s15 = int_to_ptr.vmem [resolvable:$true] %s14
      %20 = dma.hbm_to_vmem [thread:$0]  %s0, 256, %s15, [#allocation3], 128, 128, 8
    $region5: #{tpu_custom_call.1} parent=1 // pred_fallthru
      _
    // Predicated region
    $region6: #{tpu_custom_call.1} parent=1 // pred_check
      _
    $region7: #{tpu_custom_call.1} parent=1 // pred_check_branch
      %22 = sbr.rel (0) target = $region9
    $region8: #{tpu_custom_call.1} parent=1 // pred_region
      %s24 = ssub.s32 256, 256
      %25 = vsyncadd [#allocation5], %s24
      %s26 = sshll.u32 [#allocation4], 4
      %s27 = int_to_ptr.vmem [resolvable:$true] %s26
      %32 = dma.hbm_to_vmem [thread:$0]  %s1, 256, %s27, [#allocation5], 128, 128, 8
    $region9: #{tpu_custom_call.1} parent=1 // pred_fallthru
      _
    // Predicated region
    $region10: #{tpu_custom_call.1} parent=1 // pred_check
      _
    $region11: #{tpu_custom_call.1} parent=1 // pred_check_branch
      %34 = sbr.rel (0) target = $region13
    $region12: #{tpu_custom_call.1} parent=1 // pred_region
      %35 = dma.done [#allocation3], 256
    $region13: #{tpu_custom_call.1} parent=1 // pred_fallthru
      _
    // Predicated region
    $region14: #{tpu_custom_call.1} parent=1 // pred_check
      _
    $region15: #{tpu_custom_call.1} parent=1 // pred_check_branch
      %37 = sbr.rel (0) target = $region17
    $region16: #{tpu_custom_call.1} parent=1 // pred_region
      %38 = dma.done [#allocation5], 256
    $region17: #{tpu_custom_call.1} parent=1 // pred_fallthru
      _
    %v39 = vld [vmem:[#allocation2] sm:$0xff]
    %v40 = vld [vmem:[#allocation2 + $0x8] sm:$0xff]
    %v41 = vld [vmem:[#allocation4] sm:$0xff]
    %v42 = vld [vmem:[#allocation4 + $0x8] sm:$0xff]
    %vm43 = vcmask 261120
    %v44 = vsel %vm43, %v39, -inf
    %45 = vmax.xlane.f32.xlu0 %v44
    %v46 = vpop.xlane.xlu0 %45
    %v47 = vsel %vm43, %v40, -inf
    %48 = vmax.xlane.f32.xlu0 %v47
    %v49 = vpop.xlane.xlu0 %48
    %v50 = vsub.f32 %v39, %v46
    %v51 = vsub.f32 %v40, %v49
    %v52 = vmul.f32 %v50, 1.442695
    %v53 = vpow.pop %v52
    %v54 = vmul.f32 %v51, 1.442695
    %v55 = vpow.pop %v54
    %v56 = vsel %vm43, %v53, 0.0
    %57 = vadd.xlane.f32.xlu0 %v56
    %v58 = vpop.xlane.xlu0 %57
    %v59 = vsel %vm43, %v55, 0.0
    %60 = vadd.xlane.f32.xlu0 %v59
    %v61 = vpop.xlane.xlu0 %60
    %v62 = vrcp.pop %v58
    %v63 = vmul.f32 %v53, %v62
    %v64 = vrcp.pop %v61
    %v65 = vmul.f32 %v55, %v64
    %v66 = vsub.f32 %v63, %v41
    %v67 = vsub.f32 %v65, %v42
    %v68 = vmul.f32 %v66, %v66
    %v69 = vmul.f32 %v67, %v67
    %v70 = vsel %vm43, %v68, 0.0
    %71 = vadd.xlane.f32.xlu0 %v70
    %v72 = vpop.xlane.xlu0 %71
    %v73 = vsel %vm43, %v69, 0.0
    %74 = vadd.xlane.f32.xlu0 %v73
    %v75 = vpop.xlane.xlu0 %74
    %vm76 = vcmask 7168
    %77 = vst.msk [vmem:[%s2] sm:$0xff] %vm76, %v72
    %78 = vst.msk [vmem:[%s2 + $0x8] sm:$0xff] %vm76, %v75
    // Predicated region
    $region18: #{tpu_custom_call.1} parent=1 // pred_check
      _
    $region19: #{tpu_custom_call.1} parent=1 // pred_check_branch
      %80 = sbr.rel (0) target = $region21
    $region20: #{tpu_custom_call.1} parent=1 // pred_region
      _
    $region21: #{tpu_custom_call.1} parent=1 // pred_fallthru
      _
    // Predicated region
    $region22: #{tpu_custom_call.1} parent=1 // pred_check
      _
    $region23: #{tpu_custom_call.1} parent=1 // pred_check_branch
      %82 = sbr.rel (0) target = $region25
    $region24: #{tpu_custom_call.1} parent=1 // pred_region
      _
    $region25: #{tpu_custom_call.1} parent=1 // pred_fallthru
      _
    %83 = vsyncpa [#allocation3], 1
    %84 = vsyncpa [#allocation5], 1

</llo_original>
